<compile_context>
chip_gen: v5e
topology: v5e:2x2
jax: 0.10.0
libtpu: 0.0.40
codegen_flags: <defaults>
</compile_context>

<pallas_src>
import functools

import jax
import jax.numpy as jnp
from jax.experimental import pallas as pl
from jax.experimental.pallas import tpu as pltpu


def vae_kernel(x_ref, eps_ref, w1_ref, b1_ref, wh_ref, bh_ref,
               wd1_ref, bd1_ref, wd2_ref, bd2_ref,
               recon_ref, mlv_ref, *, latent_dim):
    compute_dtype = w1_ref.dtype  # bf16 on the fast path, f32 otherwise

    # ---- Encoder hidden: h = relu(x @ W1 + b1), f32 accumulate / f32 VPU math.
    h = jnp.dot(x_ref[...], w1_ref[...], preferred_element_type=jnp.float32)
    h = jnp.maximum(h + b1_ref[...], 0.0)

    # ---- Fused mean|logvar heads: one (H, 2L) matmul, lane-dense (TB, 2L) store.
    mlv = jnp.dot(h.astype(compute_dtype), wh_ref[...],
                  preferred_element_type=jnp.float32) + bh_ref[...]
    mlv_ref[...] = mlv.astype(mlv_ref.dtype)

    mean = mlv[:, :latent_dim]
    log_variance = mlv[:, latent_dim:]

    # ---- Reparameterization: z = mean + eps * exp(0.5 * logvar) (exp on EUP, f32).
    z = mean + eps_ref[...] * jnp.exp(0.5 * log_variance)

    # ---- Decoder: recon = sigmoid(relu(z @ Wd1 + bd1) @ Wd2 + bd2).
    hd = jnp.dot(z.astype(compute_dtype), wd1_ref[...],
                 preferred_element_type=jnp.float32)
    hd = jnp.maximum(hd + bd1_ref[...], 0.0)
    logits = jnp.dot(hd.astype(compute_dtype), wd2_ref[...],
                     preferred_element_type=jnp.float32) + bd2_ref[...]
    recon_ref[...] = (1.0 / (1.0 + jnp.exp(-logits))).astype(recon_ref.dtype)


def _pick_batch_tile(batch, target):
    """Largest batch tile <= target that is a multiple of 8 and divides batch."""
    if batch <= target:
        return batch
    start = (min(target, batch) // 8) * 8
    for tb in range(start, 7, -8):
        if batch % tb == 0:
            return tb
    return batch  # fall back to a single full-batch block


def vae_forward(x, eps, params, *, compute_dtype=jnp.bfloat16, batch_tile=256):
    B, Din = x.shape
    H = params["w1"].shape[1]
    L = params["wm"].shape[1]
    L2 = 2 * L

    # Fuse the mean / log-variance heads into one lane-denser weight & bias.
    wh = jnp.concatenate([params["wm"], params["wv"]], axis=1)   # (H, 2L)
    bh = jnp.concatenate([params["bm"], params["bv"]], axis=1)   # (1, 2L)

    # Cast only the dot operands at the pallas_call boundary; biases/eps stay f32.
    xc = x.astype(compute_dtype)
    w1c = params["w1"].astype(compute_dtype)
    whc = wh.astype(compute_dtype)
    wd1c = params["wd1"].astype(compute_dtype)
    wd2c = params["wd2"].astype(compute_dtype)

    tb = _pick_batch_tile(B, batch_tile)
    grid = (pl.cdiv(B, tb),)

    def row_spec(rows, cols):       # tiled along the batch grid axis
        return pl.BlockSpec((rows, cols), lambda i: (i, 0))

    def const_spec(rows, cols):     # resident in VMEM across all grid steps
        return pl.BlockSpec((rows, cols), lambda i: (0, 0))

    itemsize = jnp.dtype(compute_dtype).itemsize
    flops = 2 * B * (Din * H + H * L2 + L * H + H * Din)
    transcendentals = B * (L + Din)                       # exp (reparam) + sigmoid
    bytes_accessed = (
        B * Din * itemsize + B * L * 4                    # x, eps
        + (Din * H + H * L2 + L * H + H * Din) * itemsize # weights
        + (H + L2 + H + Din) * 4                          # biases
        + B * Din * 4 + B * L2 * 4                        # recon, mean|logvar slab
    )

    recon, mlv = pl.pallas_call(
        functools.partial(vae_kernel, latent_dim=L),
        out_shape=(
            jax.ShapeDtypeStruct((B, Din), jnp.float32),
            jax.ShapeDtypeStruct((B, L2), jnp.float32),
        ),
        grid=grid,
        in_specs=[
            row_spec(tb, Din),      # x
            row_spec(tb, L),        # eps
            const_spec(Din, H),     # w1
            const_spec(1, H),       # b1
            const_spec(H, L2),      # fused head weight
            const_spec(1, L2),      # fused head bias
            const_spec(L, H),       # decoder w1
            const_spec(1, H),       # decoder b1
            const_spec(H, Din),     # decoder w2
            const_spec(1, Din),     # decoder b2
        ],
        out_specs=(
            row_spec(tb, Din),      # reconstruction
            row_spec(tb, L2),       # lane-dense mean|logvar slab
        ),
        compiler_params=pltpu.CompilerParams(
            dimension_semantics=("parallel",),
            vmem_limit_bytes=32 * 1024 * 1024,
        ),
        cost_estimate=pl.CostEstimate(
            flops=flops,
            transcendentals=transcendentals,
            bytes_accessed=bytes_accessed,
        ),
    )(xc, eps, w1c, params["b1"], whc, bh,
      wd1c, params["bd1"], wd2c, params["bd2"])

    mean = mlv[:, :L]
    log_variance = mlv[:, L:]
    return recon, mean, log_variance


def init_linear_params(key, fan_in, fan_out):
    """Mimics torch.nn.Linear default init: U(-1/sqrt(fan_in), 1/sqrt(fan_in))."""
    kw, kb = jax.random.split(key)
    bound = 1.0 / jnp.sqrt(jnp.float32(fan_in))
    w = jax.random.uniform(kw, (fan_in, fan_out), jnp.float32, -bound, bound)
    b = jax.random.uniform(kb, (1, fan_out), jnp.float32, -bound, bound)
    return w, b


def reference_forward(x, eps, params):
    """Pure-JAX reference matching the PyTorch module semantics."""
    h = jnp.maximum(x @ params["w1"] + params["b1"], 0.0)
    mean = h @ params["wm"] + params["bm"]
    log_variance = h @ params["wv"] + params["bv"]
    z = mean + eps * jnp.exp(0.5 * log_variance)
    hd = jnp.maximum(z @ params["wd1"] + params["bd1"], 0.0)
    logits = hd @ params["wd2"] + params["bd2"]
    recon = 1.0 / (1.0 + jnp.exp(-logits))
    return recon, mean, log_variance


if __name__ == "__main__":
    batch = 64
    input_dim = 32
    hidden_dim = 64
    latent_dim = 16

    key = jax.random.PRNGKey(0)
    kx, ke, k1, k2, k3, k4, k5 = jax.random.split(key, 7)

    x = jax.random.normal(kx, (batch, input_dim), jnp.float32)
    eps = jax.random.normal(ke, (batch, latent_dim), jnp.float32)

    w1, b1 = init_linear_params(k1, input_dim, hidden_dim)
    wm, bm = init_linear_params(k2, hidden_dim, latent_dim)
    wv, bv = init_linear_params(k3, hidden_dim, latent_dim)
    wd1, bd1 = init_linear_params(k4, latent_dim, hidden_dim)
    wd2, bd2 = init_linear_params(k5, hidden_dim, input_dim)

    params = dict(w1=w1, b1=b1, wm=wm, bm=bm, wv=wv, bv=bv,
                  wd1=wd1, bd1=bd1, wd2=wd2, bd2=bd2)

    ref_recon, ref_mean, ref_logvar = reference_forward(x, eps, params)

    # f32 dot operands: tight check of module semantics (batch grid of 2 steps).
    recon32, mean32, logvar32 = vae_forward(
        x, eps, params, compute_dtype=jnp.float32, batch_tile=32)
    jax.block_until_ready((recon32, mean32, logvar32))
    assert jnp.allclose(mean32, ref_mean, atol=1e-3, rtol=1e-3)
    assert jnp.allclose(logvar32, ref_logvar, atol=1e-3, rtol=1e-3)
    assert jnp.allclose(recon32, ref_recon, atol=1e-3, rtol=1e-3)

    # bf16 dot operands (default perf path for v6e/v7x MXU): looser check.
    recon16, mean16, logvar16 = vae_forward(
        x, eps, params, compute_dtype=jnp.bfloat16, batch_tile=32)
    jax.block_until_ready((recon16, mean16, logvar16))
    assert jnp.allclose(mean16, ref_mean, atol=5e-2, rtol=5e-2)
    assert jnp.allclose(logvar16, ref_logvar, atol=5e-2, rtol=5e-2)
    assert jnp.allclose(recon16, ref_recon, atol=5e-2, rtol=5e-2)

    print("KERNEL_OK")
</pallas_src>

<mosaic_0001>
module attributes {stable_mosaic.version = 11 : i64} {
  func.func @vae_kernel(%arg0: i32, %arg1: memref<32x32xf32, #tpu.memory_space<vmem>>, %arg2: memref<32x16xf32, #tpu.memory_space<vmem>>, %arg3: memref<32x64xf32, #tpu.memory_space<vmem>>, %arg4: memref<1x64xf32, #tpu.memory_space<vmem>>, %arg5: memref<64x32xf32, #tpu.memory_space<vmem>>, %arg6: memref<1x32xf32, #tpu.memory_space<vmem>>, %arg7: memref<16x64xf32, #tpu.memory_space<vmem>>, %arg8: memref<1x64xf32, #tpu.memory_space<vmem>>, %arg9: memref<64x32xf32, #tpu.memory_space<vmem>>, %arg10: memref<1x32xf32, #tpu.memory_space<vmem>>, %arg11: memref<32x32xf32, #tpu.memory_space<vmem>>, %arg12: memref<32x32xf32, #tpu.memory_space<vmem>>) attributes {dimension_semantics = [#tpu.dimension_semantics<parallel>], iteration_bounds = array<i64: 2>, scalar_prefetch = 0 : i64, scratch_operands = 0 : i64, tpu.core_type = #tpu.core_type<tc>, window_params = [{transform_indices = @transform_0, window_bounds = array<i64: 32, 32>}, {transform_indices = @transform_1, window_bounds = array<i64: 32, 16>}, {pipeline_mode = #tpu.pipeline_mode<synchronous>, transform_indices = @transform_2, window_bounds = array<i64: 32, 64>}, {pipeline_mode = #tpu.pipeline_mode<synchronous>, transform_indices = @transform_3, window_bounds = array<i64: 1, 64>}, {pipeline_mode = #tpu.pipeline_mode<synchronous>, transform_indices = @transform_4, window_bounds = array<i64: 64, 32>}, {pipeline_mode = #tpu.pipeline_mode<synchronous>, transform_indices = @transform_5, window_bounds = array<i64: 1, 32>}, {pipeline_mode = #tpu.pipeline_mode<synchronous>, transform_indices = @transform_6, window_bounds = array<i64: 16, 64>}, {pipeline_mode = #tpu.pipeline_mode<synchronous>, transform_indices = @transform_7, window_bounds = array<i64: 1, 64>}, {pipeline_mode = #tpu.pipeline_mode<synchronous>, transform_indices = @transform_8, window_bounds = array<i64: 64, 32>}, {pipeline_mode = #tpu.pipeline_mode<synchronous>, transform_indices = @transform_9, window_bounds = array<i64: 1, 32>}, {transform_indices = @transform_10, window_bounds = array<i64: 32, 32>}, {transform_indices = @transform_11, window_bounds = array<i64: 32, 32>}]} {
    %c0 = arith.constant 0 : index
    %c0_0 = arith.constant 0 : index
    %0 = vector.load %arg1[%c0, %c0_0] : memref<32x32xf32, #tpu.memory_space<vmem>>, vector<32x32xf32>
    %c0_1 = arith.constant 0 : index
    %c0_2 = arith.constant 0 : index
    %1 = vector.load %arg3[%c0_1, %c0_2] : memref<32x64xf32, #tpu.memory_space<vmem>>, vector<32x64xf32>
    %cst = arith.constant dense<0.000000e+00> : vector<32x64xf32>
    %2 = tpu.matmul %0, %1, %cst {dimension_numbers = #tpu.dot_dimension_numbers<[1], [0], [0], [1], [0, 0, 1, 1], [], []>} : vector<32x32xf32>, vector<32x64xf32>, vector<32x64xf32> -> vector<32x64xf32>
    %c0_3 = arith.constant 0 : index
    %c0_4 = arith.constant 0 : index
    %3 = vector.load %arg4[%c0_3, %c0_4] : memref<1x64xf32, #tpu.memory_space<vmem>>, vector<1x64xf32>
    %4 = vector.broadcast %3 : vector<1x64xf32> to vector<32x64xf32>
    %5 = arith.addf %2, %4 : vector<32x64xf32>
    %cst_5 = arith.constant 0.000000e+00 : f32
    %6 = vector.broadcast %cst_5 : f32 to vector<32x64xf32>
    %7 = arith.maximumf %5, %6 : vector<32x64xf32>
    %c0_6 = arith.constant 0 : index
    %c0_7 = arith.constant 0 : index
    %8 = vector.load %arg5[%c0_6, %c0_7] : memref<64x32xf32, #tpu.memory_space<vmem>>, vector<64x32xf32>
    %cst_8 = arith.constant dense<0.000000e+00> : vector<32x32xf32>
    %9 = tpu.matmul %7, %8, %cst_8 {dimension_numbers = #tpu.dot_dimension_numbers<[1], [0], [0], [1], [0, 0, 1, 1], [], []>} : vector<32x64xf32>, vector<64x32xf32>, vector<32x32xf32> -> vector<32x32xf32>
    %c0_9 = arith.constant 0 : index
    %c0_10 = arith.constant 0 : index
    %10 = vector.load %arg6[%c0_9, %c0_10] : memref<1x32xf32, #tpu.memory_space<vmem>>, vector<1x32xf32>
    %11 = vector.broadcast %10 : vector<1x32xf32> to vector<32x32xf32>
    %12 = arith.addf %9, %11 : vector<32x32xf32>
    %c0_11 = arith.constant 0 : index
    %c0_12 = arith.constant 0 : index
    %13 = vector.load %arg12[%c0_11, %c0_12] : memref<32x32xf32, #tpu.memory_space<vmem>>, vector<32x32xf32>
    tpu.vector_store %arg12[%c0_11, %c0_12], %12 {strides = array<i32>} : memref<32x32xf32, #tpu.memory_space<vmem>>, vector<32x32xf32>,
    %14 = vector.extract_strided_slice %12 {offsets = [0, 0], sizes = [32, 16], strides = [1, 1]} : vector<32x32xf32> to vector<32x16xf32>
    %15 = vector.extract_strided_slice %12 {offsets = [0, 16], sizes = [32, 16], strides = [1, 1]} : vector<32x32xf32> to vector<32x16xf32>
    %c0_13 = arith.constant 0 : index
    %c0_14 = arith.constant 0 : index
    %16 = vector.load %arg2[%c0_13, %c0_14] : memref<32x16xf32, #tpu.memory_space<vmem>>, vector<32x16xf32>
    %cst_15 = arith.constant 5.000000e-01 : f32
    %17 = vector.broadcast %cst_15 : f32 to vector<32x16xf32>
    %18 = arith.mulf %17, %15 : vector<32x16xf32>
    %19 = math.exp %18 : vector<32x16xf32>
    %20 = arith.mulf %16, %19 : vector<32x16xf32>
    %21 = arith.addf %14, %20 : vector<32x16xf32>
    %c0_16 = arith.constant 0 : index
    %c0_17 = arith.constant 0 : index
    %22 = vector.load %arg7[%c0_16, %c0_17] : memref<16x64xf32, #tpu.memory_space<vmem>>, vector<16x64xf32>
    %cst_18 = arith.constant dense<0.000000e+00> : vector<32x64xf32>
    %23 = tpu.matmul %21, %22, %cst_18 {dimension_numbers = #tpu.dot_dimension_numbers<[1], [0], [0], [1], [0, 0, 1, 1], [], []>} : vector<32x16xf32>, vector<16x64xf32>, vector<32x64xf32> -> vector<32x64xf32>
    %c0_19 = arith.constant 0 : index
    %c0_20 = arith.constant 0 : index
    %24 = vector.load %arg8[%c0_19, %c0_20] : memref<1x64xf32, #tpu.memory_space<vmem>>, vector<1x64xf32>
    %25 = vector.broadcast %24 : vector<1x64xf32> to vector<32x64xf32>
    %26 = arith.addf %23, %25 : vector<32x64xf32>
    %cst_21 = arith.constant 0.000000e+00 : f32
    %27 = vector.broadcast %cst_21 : f32 to vector<32x64xf32>
    %28 = arith.maximumf %26, %27 : vector<32x64xf32>
    %c0_22 = arith.constant 0 : index
    %c0_23 = arith.constant 0 : index
    %29 = vector.load %arg9[%c0_22, %c0_23] : memref<64x32xf32, #tpu.memory_space<vmem>>, vector<64x32xf32>
    %cst_24 = arith.constant dense<0.000000e+00> : vector<32x32xf32>
    %30 = tpu.matmul %28, %29, %cst_24 {dimension_numbers = #tpu.dot_dimension_numbers<[1], [0], [0], [1], [0, 0, 1, 1], [], []>} : vector<32x64xf32>, vector<64x32xf32>, vector<32x32xf32> -> vector<32x32xf32>
    %c0_25 = arith.constant 0 : index
    %c0_26 = arith.constant 0 : index
    %31 = vector.load %arg10[%c0_25, %c0_26] : memref<1x32xf32, #tpu.memory_space<vmem>>, vector<1x32xf32>
    %32 = vector.broadcast %31 : vector<1x32xf32> to vector<32x32xf32>
    %33 = arith.addf %30, %32 : vector<32x32xf32>
    %cst_27 = arith.constant 0.000000e+00 : f32
    %34 = vector.broadcast %cst_27 : f32 to vector<32x32xf32>
    %35 = arith.subf %34, %33 : vector<32x32xf32>
    %36 = math.exp %35 : vector<32x32xf32>
    %cst_28 = arith.constant 1.000000e+00 : f32
    %37 = vector.broadcast %cst_28 : f32 to vector<32x32xf32>
    %38 = arith.addf %37, %36 : vector<32x32xf32>
    %cst_29 = arith.constant 1.000000e+00 : f32
    %39 = vector.broadcast %cst_29 : f32 to vector<32x32xf32>
    %40 = arith.divf %39, %38 : vector<32x32xf32>
    %c0_30 = arith.constant 0 : index
    %c0_31 = arith.constant 0 : index
    %41 = vector.load %arg11[%c0_30, %c0_31] : memref<32x32xf32, #tpu.memory_space<vmem>>, vector<32x32xf32>
    tpu.vector_store %arg11[%c0_30, %c0_31], %40 {strides = array<i32>} : memref<32x32xf32, #tpu.memory_space<vmem>>, vector<32x32xf32>,
    return
  }
  func.func @transform_0(%arg0: i32) -> (i32, i32) {
    %c0_i32 = arith.constant 0 : i32
    %c0_i32_0 = arith.constant 0 : i32
    return %arg0, %c0_i32 : i32, i32
  }
  func.func @transform_1(%arg0: i32) -> (i32, i32) {
    %c0_i32 = arith.constant 0 : i32
    %c0_i32_0 = arith.constant 0 : i32
    return %arg0, %c0_i32 : i32, i32
  }
  func.func @transform_2(%arg0: i32) -> (i32, i32) {
    %c0_i32 = arith.constant 0 : i32
    %c0_i32_0 = arith.constant 0 : i32
    %c0_i32_1 = arith.constant 0 : i32
    return %c0_i32, %c0_i32_0 : i32, i32
  }
  func.func @transform_3(%arg0: i32) -> (i32, i32) {
    %c0_i32 = arith.constant 0 : i32
    %c0_i32_0 = arith.constant 0 : i32
    %c0_i32_1 = arith.constant 0 : i32
    return %c0_i32, %c0_i32_0 : i32, i32
  }
  func.func @transform_4(%arg0: i32) -> (i32, i32) {
    %c0_i32 = arith.constant 0 : i32
    %c0_i32_0 = arith.constant 0 : i32
    %c0_i32_1 = arith.constant 0 : i32
    return %c0_i32, %c0_i32_0 : i32, i32
  }
  func.func @transform_5(%arg0: i32) -> (i32, i32) {
    %c0_i32 = arith.constant 0 : i32
    %c0_i32_0 = arith.constant 0 : i32
    %c0_i32_1 = arith.constant 0 : i32
    return %c0_i32, %c0_i32_0 : i32, i32
  }
  func.func @transform_6(%arg0: i32) -> (i32, i32) {
    %c0_i32 = arith.constant 0 : i32
    %c0_i32_0 = arith.constant 0 : i32
    %c0_i32_1 = arith.constant 0 : i32
    return %c0_i32, %c0_i32_0 : i32, i32
  }
  func.func @transform_7(%arg0: i32) -> (i32, i32) {
    %c0_i32 = arith.constant 0 : i32
    %c0_i32_0 = arith.constant 0 : i32
    %c0_i32_1 = arith.constant 0 : i32
    return %c0_i32, %c0_i32_0 : i32, i32
  }
  func.func @transform_8(%arg0: i32) -> (i32, i32) {
    %c0_i32 = arith.constant 0 : i32
    %c0_i32_0 = arith.constant 0 : i32
    %c0_i32_1 = arith.constant 0 : i32
    return %c0_i32, %c0_i32_0 : i32, i32
  }
  func.func @transform_9(%arg0: i32) -> (i32, i32) {
    %c0_i32 = arith.constant 0 : i32
    %c0_i32_0 = arith.constant 0 : i32
    %c0_i32_1 = arith.constant 0 : i32
    return %c0_i32, %c0_i32_0 : i32, i32
  }
  func.func @transform_10(%arg0: i32) -> (i32, i32) {
    %c0_i32 = arith.constant 0 : i32
    %c0_i32_0 = arith.constant 0 : i32
    return %arg0, %c0_i32 : i32, i32
  }
  func.func @transform_11(%arg0: i32) -> (i32, i32) {
    %c0_i32 = arith.constant 0 : i32
    %c0_i32_0 = arith.constant 0 : i32
    return %arg0, %c0_i32 : i32, i32
  }
}

</mosaic_0001>

<llo_original>
// kernel: tpu_custom_call.1
$region0: #{tpu_custom_call.1}
  #allocation0 [shape = 'u32[]', space=smem, size = 0x4, offset = 0x4, fixed_abs, tag = 'smem constant byte address 0x4 - core index']
  #allocation1 [shape = 'u32[72,128]{1,0:T(1,128)}', space=vmem, size = 0x9000, scoped, tag = 'internal scratch']
  %s0 = inlined_call_operand.vmem [shape: f32[64,32], index: 0, kind: input, shape index: {}]
  %s1 = inlined_call_operand.vmem [shape: f32[64,16], index: 1, kind: input, shape index: {}]
  %s2 = inlined_call_operand.vmem [shape: f32[32,64], index: 2, kind: input, shape index: {}]
  %s3 = inlined_call_operand.vmem [shape: f32[1,64], index: 3, kind: input, shape index: {}]
  %s4 = inlined_call_operand.vmem [shape: f32[64,32], index: 4, kind: input, shape index: {}]
  %s5 = inlined_call_operand.vmem [shape: f32[1,32], index: 5, kind: input, shape index: {}]
  %s6 = inlined_call_operand.vmem [shape: f32[16,64], index: 6, kind: input, shape index: {}]
  %s7 = inlined_call_operand.vmem [shape: f32[1,64], index: 7, kind: input, shape index: {}]
  %s8 = inlined_call_operand.vmem [shape: f32[64,32], index: 8, kind: input, shape index: {}]
  %s9 = inlined_call_operand.vmem [shape: f32[1,32], index: 9, kind: input, shape index: {}]
  %s10 = inlined_call_operand.vmem [shape: f32[64,32], index: 10, kind: output, shape index: {0}]
  %s11 = inlined_call_operand.vmem [shape: f32[64,32], index: 11, kind: output, shape index: {1}]
  %12 = xla_tuple %s10, %s11
  %s13 = sld [smem:[#allocation0]]
  $region81: #{tpu_custom_call.1} parent=0
    _
  %s15 = ssub.s32 1, %s13
  %s16 = scalar_select 0, %s15, %s13
  loop: start=0, step=1, limit=4
  $region2: #{tpu_custom_call.1} parent=0 // loop_pre_header
    _
  $region3: #{tpu_custom_call.1} parent=0 // loop_header
    %s18 = sphi 0, %s22
    %p19 = scmp.ge.s32.totalorder %s18, 4
    %s28 = sphi 0, %s30
    %s31 = sphi 0, %s28
    %s32 = sphi 0, %s31
    %s48 = sphi 0, %s32
    %s54 = sphi 0, %s56
    %s57 = sphi 0, %s54
    %s58 = sphi 0, %s57
    %s74 = sphi 0, %s58
    %s78 = sphi 0, %s78
    %s80 = sphi 0, %s78
    %s81 = sphi 0, %s80
    %s95 = sphi 0, %s81
    %s99 = sphi 0, %s99
    %s101 = sphi 0, %s99
    %s102 = sphi 0, %s101
    %s116 = sphi 0, %s102
    %s120 = sphi 0, %s120
    %s122 = sphi 0, %s120
    %s123 = sphi 0, %s122
    %s137 = sphi 0, %s123
    %s141 = sphi 0, %s141
    %s143 = sphi 0, %s141
    %s144 = sphi 0, %s143
    %s158 = sphi 0, %s144
    %s162 = sphi 0, %s162
    %s164 = sphi 0, %s162
    %s165 = sphi 0, %s164
    %s179 = sphi 0, %s165
    %s183 = sphi 0, %s183
    %s185 = sphi 0, %s183
    %s186 = sphi 0, %s185
    %s200 = sphi 0, %s186
    %s204 = sphi 0, %s204
    %s206 = sphi 0, %s204
    %s207 = sphi 0, %s206
    %s221 = sphi 0, %s207
    %s225 = sphi 0, %s225
    %s227 = sphi 0, %s225
    %s228 = sphi 0, %s227
    %s242 = sphi 0, %s228
    %s248 = sphi 0, %s250
    %s251 = sphi 0, %s248
    %s252 = sphi 0, %s251
    %s268 = sphi 0, %s252
    %s274 = sphi 0, %s276
    %s277 = sphi 0, %s274
    %s278 = sphi 0, %s277
    %s294 = sphi 0, %s278
  $region4: #{tpu_custom_call.1} parent=0 // loop_header_branch
    %21 = sbr.rel (%p19) target = $region8
  $region5: #{tpu_custom_call.1} parent=0 // loop_body
    %s23 = ssub.s32 %s18, 1
    %s24 = ssub.s32 %s18, 2
    %s25 = sadd.s32 %s18, 1
    %s26 = ssub.s32 %s18, %s25
    %p27 = scmp.eq.s32.totalorder %s26, 0
    %s29 = sadd.s32 %s28, 1
    %s30 = scalar_select %p27, %s28, %s29
    %p33 = pneg %p27
    %p34 = scmp.eq.s32.totalorder %s18, 1
    %p35 = por %p33, %p34
    %p36 = scmp.ne.s32.totalorder %s28, %s31
    %p37 = scmp.eq.s32.totalorder %s18, 0
    %p38 = por %p36, %p37
    %p39 = scmp.ne.s32.totalorder %s28, %s31
    %p40 = scmp.eq.s32.totalorder %s23, 1
    %p41 = por %p39, %p40
    %p42 = scmp.ne.s32.totalorder %s31, %s32
    %p43 = scmp.eq.s32.totalorder %s23, 0
    %p44 = por %p42, %p43
    %p45 = scmp.ne.s32.totalorder %s31, %s32
    %p46 = scmp.eq.s32.totalorder %s24, 1
    %p47 = por %p45, %p46
    %p49 = scmp.ne.s32.totalorder %s32, %s48
    %p50 = scmp.eq.s32.totalorder %s24, 0
    %p51 = por %p49, %p50
    %s52 = ssub.s32 %s18, %s25
    %p53 = scmp.eq.s32.totalorder %s52, 0
    %s55 = sadd.s32 %s54, 1
    %s56 = scalar_select %p53, %s54, %s55
    %p59 = pneg %p53
    %p60 = scmp.eq.s32.totalorder %s18, 1
    %p61 = por %p59, %p60
    %p62 = scmp.ne.s32.totalorder %s54, %s57
    %p63 = scmp.eq.s32.totalorder %s18, 0
    %p64 = por %p62, %p63
    %p65 = scmp.ne.s32.totalorder %s54, %s57
    %p66 = scmp.eq.s32.totalorder %s23, 1
    %p67 = por %p65, %p66
    %p68 = scmp.ne.s32.totalorder %s57, %s58
    %p69 = scmp.eq.s32.totalorder %s23, 0
    %p70 = por %p68, %p69
    %p71 = scmp.ne.s32.totalorder %s57, %s58
    %p72 = scmp.eq.s32.totalorder %s24, 1
    %p73 = por %p71, %p72
    %p75 = scmp.ne.s32.totalorder %s58, %s74
    %p76 = scmp.eq.s32.totalorder %s24, 0
    %p77 = por %p75, %p76
    %s79 = sadd.s32 %s78, 1
    %p82 = scmp.eq.s32.totalorder %s18, 1
    %p83 = scmp.ne.s32.totalorder %s78, %s80
    %p84 = scmp.eq.s32.totalorder %s18, 0
    %p85 = por %p83, %p84
    %p86 = scmp.ne.s32.totalorder %s78, %s80
    %p87 = scmp.eq.s32.totalorder %s23, 1
    %p88 = por %p86, %p87
    %p89 = scmp.ne.s32.totalorder %s80, %s81
    %p90 = scmp.eq.s32.totalorder %s23, 0
    %p91 = por %p89, %p90
    %p92 = scmp.ne.s32.totalorder %s80, %s81
    %p93 = scmp.eq.s32.totalorder %s24, 1
    %p94 = por %p92, %p93
    %p96 = scmp.ne.s32.totalorder %s81, %s95
    %p97 = scmp.eq.s32.totalorder %s24, 0
    %p98 = por %p96, %p97
    %s100 = sadd.s32 %s99, 1
    %p103 = scmp.eq.s32.totalorder %s18, 1
    %p104 = scmp.ne.s32.totalorder %s99, %s101
    %p105 = scmp.eq.s32.totalorder %s18, 0
    %p106 = por %p104, %p105
    %p107 = scmp.ne.s32.totalorder %s99, %s101
    %p108 = scmp.eq.s32.totalorder %s23, 1
    %p109 = por %p107, %p108
    %p110 = scmp.ne.s32.totalorder %s101, %s102
    %p111 = scmp.eq.s32.totalorder %s23, 0
    %p112 = por %p110, %p111
    %p113 = scmp.ne.s32.totalorder %s101, %s102
    %p114 = scmp.eq.s32.totalorder %s24, 1
    %p115 = por %p113, %p114
    %p117 = scmp.ne.s32.totalorder %s102, %s116
    %p118 = scmp.eq.s32.totalorder %s24, 0
    %p119 = por %p117, %p118
    %s121 = sadd.s32 %s120, 1
    %p124 = scmp.eq.s32.totalorder %s18, 1
    %p125 = scmp.ne.s32.totalorder %s120, %s122
    %p126 = scmp.eq.s32.totalorder %s18, 0
    %p127 = por %p125, %p126
    %p128 = scmp.ne.s32.totalorder %s120, %s122
    %p129 = scmp.eq.s32.totalorder %s23, 1
    %p130 = por %p128, %p129
    %p131 = scmp.ne.s32.totalorder %s122, %s123
    %p132 = scmp.eq.s32.totalorder %s23, 0
    %p133 = por %p131, %p132
    %p134 = scmp.ne.s32.totalorder %s122, %s123
    %p135 = scmp.eq.s32.totalorder %s24, 1
    %p136 = por %p134, %p135
    %p138 = scmp.ne.s32.totalorder %s123, %s137
    %p139 = scmp.eq.s32.totalorder %s24, 0
    %p140 = por %p138, %p139
    %s142 = sadd.s32 %s141, 1
    %p145 = scmp.eq.s32.totalorder %s18, 1
    %p146 = scmp.ne.s32.totalorder %s141, %s143
    %p147 = scmp.eq.s32.totalorder %s18, 0
    %p148 = por %p146, %p147
    %p149 = scmp.ne.s32.totalorder %s141, %s143
    %p150 = scmp.eq.s32.totalorder %s23, 1
    %p151 = por %p149, %p150
    %p152 = scmp.ne.s32.totalorder %s143, %s144
    %p153 = scmp.eq.s32.totalorder %s23, 0
    %p154 = por %p152, %p153
    %p155 = scmp.ne.s32.totalorder %s143, %s144
    %p156 = scmp.eq.s32.totalorder %s24, 1
    %p157 = por %p155, %p156
    %p159 = scmp.ne.s32.totalorder %s144, %s158
    %p160 = scmp.eq.s32.totalorder %s24, 0
    %p161 = por %p159, %p160
    %s163 = sadd.s32 %s162, 1
    %p166 = scmp.eq.s32.totalorder %s18, 1
    %p167 = scmp.ne.s32.totalorder %s162, %s164
    %p168 = scmp.eq.s32.totalorder %s18, 0
    %p169 = por %p167, %p168
    %p170 = scmp.ne.s32.totalorder %s162, %s164
    %p171 = scmp.eq.s32.totalorder %s23, 1
    %p172 = por %p170, %p171
    %p173 = scmp.ne.s32.totalorder %s164, %s165
    %p174 = scmp.eq.s32.totalorder %s23, 0
    %p175 = por %p173, %p174
    %p176 = scmp.ne.s32.totalorder %s164, %s165
    %p177 = scmp.eq.s32.totalorder %s24, 1
    %p178 = por %p176, %p177
    %p180 = scmp.ne.s32.totalorder %s165, %s179
    %p181 = scmp.eq.s32.totalorder %s24, 0
    %p182 = por %p180, %p181
    %s184 = sadd.s32 %s183, 1
    %p187 = scmp.eq.s32.totalorder %s18, 1
    %p188 = scmp.ne.s32.totalorder %s183, %s185
    %p189 = scmp.eq.s32.totalorder %s18, 0
    %p190 = por %p188, %p189
    %p191 = scmp.ne.s32.totalorder %s183, %s185
    %p192 = scmp.eq.s32.totalorder %s23, 1
    %p193 = por %p191, %p192
    %p194 = scmp.ne.s32.totalorder %s185, %s186
    %p195 = scmp.eq.s32.totalorder %s23, 0
    %p196 = por %p194, %p195
    %p197 = scmp.ne.s32.totalorder %s185, %s186
    %p198 = scmp.eq.s32.totalorder %s24, 1
    %p199 = por %p197, %p198
    %p201 = scmp.ne.s32.totalorder %s186, %s200
    %p202 = scmp.eq.s32.totalorder %s24, 0
    %p203 = por %p201, %p202
    %s205 = sadd.s32 %s204, 1
    %p208 = scmp.eq.s32.totalorder %s18, 1
    %p209 = scmp.ne.s32.totalorder %s204, %s206
    %p210 = scmp.eq.s32.totalorder %s18, 0
    %p211 = por %p209, %p210
    %p212 = scmp.ne.s32.totalorder %s204, %s206
    %p213 = scmp.eq.s32.totalorder %s23, 1
    %p214 = por %p212, %p213
    %p215 = scmp.ne.s32.totalorder %s206, %s207
    %p216 = scmp.eq.s32.totalorder %s23, 0
    %p217 = por %p215, %p216
    %p218 = scmp.ne.s32.totalorder %s206, %s207
    %p219 = scmp.eq.s32.totalorder %s24, 1
    %p220 = por %p218, %p219
    %p222 = scmp.ne.s32.totalorder %s207, %s221
    %p223 = scmp.eq.s32.totalorder %s24, 0
    %p224 = por %p222, %p223
    %s226 = sadd.s32 %s225, 1
    %p229 = scmp.eq.s32.totalorder %s18, 1
    %p230 = scmp.ne.s32.totalorder %s225, %s227
    %p231 = scmp.eq.s32.totalorder %s18, 0
    %p232 = por %p230, %p231
    %p233 = scmp.ne.s32.totalorder %s225, %s227
    %p234 = scmp.eq.s32.totalorder %s23, 1
    %p235 = por %p233, %p234
    %p236 = scmp.ne.s32.totalorder %s227, %s228
    %p237 = scmp.eq.s32.totalorder %s23, 0
    %p238 = por %p236, %p237
    %p239 = scmp.ne.s32.totalorder %s227, %s228
    %p240 = scmp.eq.s32.totalorder %s24, 1
    %p241 = por %p239, %p240
    %p243 = scmp.ne.s32.totalorder %s228, %s242
    %p244 = scmp.eq.s32.totalorder %s24, 0
    %p245 = por %p243, %p244
    %s246 = ssub.s32 %s18, %s25
    %p247 = scmp.eq.s32.totalorder %s246, 0
    %s249 = sadd.s32 %s248, 1
    %s250 = scalar_select %p247, %s248, %s249
    %p253 = pneg %p247
    %p254 = scmp.eq.s32.totalorder %s18, 1
    %p255 = por %p253, %p254
    %p256 = scmp.ne.s32.totalorder %s248, %s251
    %p257 = scmp.eq.s32.totalorder %s18, 0
    %p258 = por %p256, %p257
    %p259 = scmp.ne.s32.totalorder %s248, %s251
    %p260 = scmp.eq.s32.totalorder %s23, 1
    %p261 = por %p259, %p260
    %p262 = scmp.ne.s32.totalorder %s251, %s252
    %p263 = scmp.eq.s32.totalorder %s23, 0
    %p264 = por %p262, %p263
    %p265 = scmp.ne.s32.totalorder %s251, %s252
    %p266 = scmp.eq.s32.totalorder %s24, 1
    %p267 = por %p265, %p266
    %p269 = scmp.ne.s32.totalorder %s252, %s268
    %p270 = scmp.eq.s32.totalorder %s24, 0
    %p271 = por %p269, %p270
    %s272 = ssub.s32 %s18, %s25
    %p273 = scmp.eq.s32.totalorder %s272, 0
    %s275 = sadd.s32 %s274, 1
    %s276 = scalar_select %p273, %s274, %s275
    %p279 = pneg %p273
    %p280 = scmp.eq.s32.totalorder %s18, 1
    %p281 = por %p279, %p280
    %p282 = scmp.ne.s32.totalorder %s274, %s277
    %p283 = scmp.eq.s32.totalorder %s18, 0
    %p284 = por %p282, %p283
    %p285 = scmp.ne.s32.totalorder %s274, %s277
    %p286 = scmp.eq.s32.totalorder %s23, 1
    %p287 = por %p285, %p286
    %p288 = scmp.ne.s32.totalorder %s277, %s278
    %p289 = scmp.eq.s32.totalorder %s23, 0
    %p290 = por %p288, %p289
    %p291 = scmp.ne.s32.totalorder %s277, %s278
    %p292 = scmp.eq.s32.totalorder %s24, 1
    %p293 = por %p291, %p292
    %p295 = scmp.ne.s32.totalorder %s278, %s294
    %p296 = scmp.eq.s32.totalorder %s24, 0
    %p297 = por %p295, %p296
    %p298 = scmp.le.s32.totalorder 1, %s18
    %p299 = scmp.lt.s32.totalorder %s18, 3
    %p300 = pnand %p298, %p299
    %p301 = pneg %p300
    // Predicated region
    $region9: #{tpu_custom_call.1} parent=5 // pred_check
      _
    $region10: #{tpu_custom_call.1} parent=5 // pred_check_branch
      %303 = sbr.rel (%p300) target = $region12
    $region11: #{tpu_custom_call.1} parent=5 // pred_region
      %s304 = ssub.s32 %s18, 1
      // Predicated region
      $region13: #{tpu_custom_call.1} parent=11 // pred_check
        %p305 = pneg %p91
      $region14: #{tpu_custom_call.1} parent=11 // pred_check_branch
        %307 = sbr.rel (%p305) target = $region16
      $region15: #{tpu_custom_call.1} parent=11 // pred_region
        _
      $region16: #{tpu_custom_call.1} parent=11 // pred_fallthru
        _
      // Predicated region
      $region17: #{tpu_custom_call.1} parent=11 // pred_check
        %p308 = pneg %p112
      $region18: #{tpu_custom_call.1} parent=11 // pred_check_branch
        %310 = sbr.rel (%p308) target = $region20
      $region19: #{tpu_custom_call.1} parent=11 // pred_region
        _
      $region20: #{tpu_custom_call.1} parent=11 // pred_fallthru
        _
      // Predicated region
      $region21: #{tpu_custom_call.1} parent=11 // pred_check
        %p311 = pneg %p133
      $region22: #{tpu_custom_call.1} parent=11 // pred_check_branch
        %313 = sbr.rel (%p311) target = $region24
      $region23: #{tpu_custom_call.1} parent=11 // pred_region
        _
      $region24: #{tpu_custom_call.1} parent=11 // pred_fallthru
        _
      // Predicated region
      $region25: #{tpu_custom_call.1} parent=11 // pred_check
        %p314 = pneg %p154
      $region26: #{tpu_custom_call.1} parent=11 // pred_check_branch
        %316 = sbr.rel (%p314) target = $region28
      $region27: #{tpu_custom_call.1} parent=11 // pred_region
        _
      $region28: #{tpu_custom_call.1} parent=11 // pred_fallthru
        _
      // Predicated region
      $region29: #{tpu_custom_call.1} parent=11 // pred_check
        %p317 = pneg %p175
      $region30: #{tpu_custom_call.1} parent=11 // pred_check_branch
        %319 = sbr.rel (%p317) target = $region32
      $region31: #{tpu_custom_call.1} parent=11 // pred_region
        _
      $region32: #{tpu_custom_call.1} parent=11 // pred_fallthru
        _
      // Predicated region
      $region33: #{tpu_custom_call.1} parent=11 // pred_check
        %p320 = pneg %p196
      $region34: #{tpu_custom_call.1} parent=11 // pred_check_branch
        %322 = sbr.rel (%p320) target = $region36
      $region35: #{tpu_custom_call.1} parent=11 // pred_region
        _
      $region36: #{tpu_custom_call.1} parent=11 // pred_fallthru
        _
      // Predicated region
      $region37: #{tpu_custom_call.1} parent=11 // pred_check
        %p323 = pneg %p217
      $region38: #{tpu_custom_call.1} parent=11 // pred_check_branch
        %325 = sbr.rel (%p323) target = $region40
      $region39: #{tpu_custom_call.1} parent=11 // pred_region
        _
      $region40: #{tpu_custom_call.1} parent=11 // pred_fallthru
        _
      // Predicated region
      $region41: #{tpu_custom_call.1} parent=11 // pred_check
        %p326 = pneg %p238
      $region42: #{tpu_custom_call.1} parent=11 // pred_check_branch
        %328 = sbr.rel (%p326) target = $region44
      $region43: #{tpu_custom_call.1} parent=11 // pred_region
        _
      $region44: #{tpu_custom_call.1} parent=11 // pred_fallthru
        _
    $region12: #{tpu_custom_call.1} parent=5 // pred_fallthru
      _
    %p329 = scmp.lt.s32.totalorder %s18, 2
    // Predicated region
    $region45: #{tpu_custom_call.1} parent=5 // pred_check
      %p330 = pneg %p329
    $region46: #{tpu_custom_call.1} parent=5 // pred_check_branch
      %332 = sbr.rel (%p330) target = $region48
    $region47: #{tpu_custom_call.1} parent=5 // pred_region
      // Predicated region
      $region49: #{tpu_custom_call.1} parent=47 // pred_check
        %p333 = pneg %p38
      $region50: #{tpu_custom_call.1} parent=47 // pred_check_branch
        %335 = sbr.rel (%p333) target = $region52
      $region51: #{tpu_custom_call.1} parent=47 // pred_region
        %s336 = smul.u32 4, %s18
        %p337 = scmp.lt.s32.totalorder %s336, 7
        %s338 = scalar_select %p337, %s336, 7
        %s339 = smul.addr %s338, 8
        %s340 = scalar_lea.vmem %s0, %s339
        %s341 = smul.u32 4, %s18
      $region52: #{tpu_custom_call.1} parent=47 // pred_fallthru
        _
      // Predicated region
      $region53: #{tpu_custom_call.1} parent=47 // pred_check
        %p342 = pneg %p64
      $region54: #{tpu_custom_call.1} parent=47 // pred_check_branch
        %344 = sbr.rel (%p342) target = $region56
      $region55: #{tpu_custom_call.1} parent=47 // pred_region
        %s345 = smul.u32 4, %s18
        %p346 = scmp.lt.s32.totalorder %s345, 7
        %s347 = scalar_select %p346, %s345, 7
        %s348 = smul.addr %s347, 8
        %s349 = scalar_lea.vmem %s1, %s348
        %s350 = smul.u32 4, %s18
      $region56: #{tpu_custom_call.1} parent=47 // pred_fallthru
        _
    $region48: #{tpu_custom_call.1} parent=5 // pred_fallthru
      _
    %p351 = scmp.le.s32.totalorder 1, %s18
    %p352 = scmp.lt.s32.totalorder %s18, 3
    %p353 = pnand %p351, %p352
    %p354 = pneg %p353
    // Predicated region
    $region57: #{tpu_custom_call.1} parent=5 // pred_check
      _
    $region58: #{tpu_custom_call.1} parent=5 // pred_check_branch
      %356 = sbr.rel (%p353) target = $region60
    $region59: #{tpu_custom_call.1} parent=5 // pred_region
      %s357 = ssub.s32 %s18, 1
      %s358 = smul.u32 4, %s23
      %p359 = scmp.lt.s32.totalorder %s358, 7
      %s360 = scalar_select %p359, %s358, 7
      %s361 = smul.addr %s360, 8
      %s362 = scalar_lea.vmem %s0, %s361
      %p363 = pneg %p44
      %p364 = pneg %p41
      %s365 = smul.u32 4, %s23
      %p366 = scmp.lt.s32.totalorder %s365, 7
      %s367 = scalar_select %p366, %s365, 7
      %s368 = smul.addr %s367, 8
      %s369 = scalar_lea.vmem %s1, %s368
      %p370 = pneg %p70
      %p371 = pneg %p67
      %p372 = pneg %p91
      %p373 = pneg %p88
      %p374 = pneg %p112
      %p375 = pneg %p109
      %p376 = pneg %p133
      %p377 = pneg %p130
      %p378 = pneg %p154
      %p379 = pneg %p151
      %p380 = pneg %p175
      %p381 = pneg %p172
      %p382 = pneg %p196
      %p383 = pneg %p193
      %p384 = pneg %p217
      %p385 = pneg %p214
      %p386 = pneg %p238
      %p387 = pneg %p235
      %p388 = pneg %p264
      %p389 = pneg %p261
      %s390 = smul.u32 4, %s23
      %p391 = scmp.lt.s32.totalorder %s390, 7
      %s392 = scalar_select %p391, %s390, 7
      %s393 = smul.addr %s392, 8
      %s394 = scalar_lea.vmem %s10, %s393
      %p395 = pneg %p290
      %p396 = pneg %p287
      %s397 = smul.u32 4, %s23
      %p398 = scmp.lt.s32.totalorder %s397, 7
      %s399 = scalar_select %p398, %s397, 7
      %s400 = smul.addr %s399, 8
      %s401 = scalar_lea.vmem %s11, %s400
      %s402 = smul.u32 4, %s23
      %p403 = scmp.lt.s32.totalorder %s402, 7
      %s404 = scalar_select %p403, %s402, 7
      %s405 = smul.addr %s404, 8
      %s406 = scalar_lea.vmem %s0, %s405
      %s407 = smul.u32 4, %s23
      %s408 = smul.u32 4, %s23
      %p409 = scmp.lt.s32.totalorder %s408, 7
      %s410 = scalar_select %p409, %s408, 7
      %s411 = smul.addr %s410, 8
      %s412 = scalar_lea.vmem %s1, %s411
      %s413 = smul.u32 4, %s23
      %s414 = smul.u32 4, %s23
      %p415 = scmp.lt.s32.totalorder %s414, 7
      %s416 = scalar_select %p415, %s414, 7
      %s417 = smul.addr %s416, 8
      %s418 = scalar_lea.vmem %s10, %s417
      %s419 = smul.u32 4, %s23
      %s420 = smul.u32 4, %s23
      %p421 = scmp.lt.s32.totalorder %s420, 7
      %s422 = scalar_select %p421, %s420, 7
      %s423 = smul.addr %s422, 8
      %s424 = scalar_lea.vmem %s11, %s423
      %s425 = smul.u32 4, %s23
      %v426 = vld [vmem:[%s406] sm:$0xff]
      %v427 = vld [vmem:[%s406 + $0x8] sm:$0xff]
      %v428 = vld [vmem:[%s406 + $0x10] sm:$0xff]
      %v429 = vld [vmem:[%s406 + $0x18] sm:$0xff]
      %v430 = vld [vmem:[%s2] sm:$0xff]
      %v431 = vld [vmem:[%s2 + $0x8] sm:$0xff]
      %v432 = vld [vmem:[%s2 + $0x10] sm:$0xff]
      %v433 = vld [vmem:[%s2 + $0x18] sm:$0xff]
      %v434 = vld [vmem:[%s3] sm:$0x1]
      %v436 = vperm.slane %v434, 0
      %vm438 = vcmask 261120
      %v440 = vsel %vm438, %v426, 0
      %v443 = vsel %vm438, %v427, 0
      %v446 = vsel %vm438, %v428, 0
      %v449 = vsel %vm438, %v429, 0
      %451 = vmatpush.msra.mxu0 0.0
      %452 = vmatpush.msra.mxu0 0.0
      %453 = vmatpush.msra.mxu0 0.0
      %454 = vmatpush.msra.mxu0 0.0
      %455 = vmatpush.msra.mxu0 0.0
      %456 = vmatpush.msra.mxu0 0.0
      %457 = vmatpush.msra.mxu0 0.0
      %458 = vmatpush.msra.mxu0 0.0
      %459 = vmatpush.msra.mxu0 0.0
      %460 = vmatpush.msra.mxu0 0.0
      %461 = vmatpush.msra.mxu0 0.0
      %462 = vmatpush.msra.mxu0 0.0
      %463 = vmatpush.msra.mxu0 %v433
      %464 = vmatpush.msra.mxu0 %v432
      %465 = vmatpush.msra.mxu0 %v431
      %466 = vmatpush.msra.mxu0 %v430
      %467 = vmatmul.f32.gmra.mxu0 %v440
      %v468 = vpop.f32.mrf.mxu0
      %v469 = vadd.f32 %v436, %v468
      %470 = vmatmul.f32.gmra.mxu0 %v443
      %v471 = vpop.f32.mrf.mxu0
      %v472 = vadd.f32 %v436, %v471
      %473 = vmatmul.f32.gmra.mxu0 %v446
      %v474 = vpop.f32.mrf.mxu0
      %v475 = vadd.f32 %v436, %v474
      %476 = vmatmul.f32.gmra.mxu0 %v449
      %v477 = vpop.f32.mrf.mxu0
      %v478 = vadd.f32 %v436, %v477
      %479 = vdwg.mxu0
      %v480 = vmax.f32 %v469, 0.0
      %v481 = vmax.f32 %v472, 0.0
      %v482 = vmax.f32 %v475, 0.0
      %v483 = vmax.f32 %v478, 0.0
      %v484 = vld [vmem:[%s4] sm:$0xff]
      %v485 = vld [vmem:[%s4 + $0x8] sm:$0xff]
      %v486 = vld [vmem:[%s4 + $0x10] sm:$0xff]
      %v487 = vld [vmem:[%s4 + $0x18] sm:$0xff]
      %v488 = vld [vmem:[%s4 + $0x20] sm:$0xff]
      %v489 = vld [vmem:[%s4 + $0x28] sm:$0xff]
      %v490 = vld [vmem:[%s4 + $0x30] sm:$0xff]
      %v491 = vld [vmem:[%s4 + $0x38] sm:$0xff]
      %v492 = vld [vmem:[%s5] sm:$0x1]
      %v494 = vperm.slane %v492, 0
      %vm496 = vcmask 523264
      %v498 = vsel %vm496, %v480, 0
      %v501 = vsel %vm496, %v481, 0
      %v504 = vsel %vm496, %v482, 0
      %v507 = vsel %vm496, %v483, 0
      %509 = vmatpush.msra.mxu0 0.0
      %510 = vmatpush.msra.mxu0 0.0
      %511 = vmatpush.msra.mxu0 0.0
      %512 = vmatpush.msra.mxu0 0.0
      %513 = vmatpush.msra.mxu0 0.0
      %514 = vmatpush.msra.mxu0 0.0
      %515 = vmatpush.msra.mxu0 0.0
      %516 = vmatpush.msra.mxu0 0.0
      %517 = vmatpush.msra.mxu0 %v491
      %518 = vmatpush.msra.mxu0 %v490
      %519 = vmatpush.msra.mxu0 %v489
      %520 = vmatpush.msra.mxu0 %v488
      %521 = vmatpush.msra.mxu0 %v487
      %522 = vmatpush.msra.mxu0 %v486
      %523 = vmatpush.msra.mxu0 %v485
      %524 = vmatpush.msra.mxu0 %v484
      %525 = vmatmul.f32.gmra.mxu0 %v498
      %v526 = vpop.f32.mrf.mxu0
      %v527 = vadd.f32 %v494, %v526
      %528 = vmatmul.f32.gmra.mxu0 %v501
      %v529 = vpop.f32.mrf.mxu0
      %v530 = vadd.f32 %v494, %v529
      %531 = vmatmul.f32.gmra.mxu0 %v504
      %v532 = vpop.f32.mrf.mxu0
      %v533 = vadd.f32 %v494, %v532
      %534 = vmatmul.f32.gmra.mxu0 %v507
      %v535 = vpop.f32.mrf.mxu0
      %v536 = vadd.f32 %v494, %v535
      %537 = vdwg.mxu0
      %538 = vst.msk [vmem:[%s424] sm:$0xff] %vm438, %v527
      %539 = vst.msk [vmem:[%s424 + $0x8] sm:$0xff] %vm438, %v530
      %540 = vst.msk [vmem:[%s424 + $0x10] sm:$0xff] %vm438, %v533
      %541 = vst.msk [vmem:[%s424 + $0x18] sm:$0xff] %vm438, %v536
      %v542 = vld [vmem:[%s412] sm:$0xff]
      %v543 = vld [vmem:[%s412 + $0x8] sm:$0xff]
      %v544 = vld [vmem:[%s412 + $0x10] sm:$0xff]
      %v545 = vld [vmem:[%s412 + $0x18] sm:$0xff]
      %v546 = vmul.f32 %v527, 0.5
      %v547 = vmul.f32 %v530, 0.5
      %v548 = vmul.f32 %v533, 0.5
      %v549 = vmul.f32 %v536, 0.5
      %v550 = vmul.f32 %v546, 1.442695
      %v551 = vpow.pop %v550
      %v552 = vmul.f32 %v547, 1.442695
      %v553 = vpow.pop %v552
      %v554 = vmul.f32 %v548, 1.442695
      %v555 = vpow.pop %v554
      %v556 = vmul.f32 %v549, 1.442695
      %v557 = vpow.pop %v556
      %562 = vrot.lane.b32.xlu0 %v551, 112
      %v563 = vpop.permute.xlu0 %562
      %564 = vrot.lane.b32.xlu0 %v553, 112
      %v565 = vpop.permute.xlu0 %564
      %566 = vrot.lane.b32.xlu0 %v555, 112
      %v567 = vpop.permute.xlu0 %566
      %568 = vrot.lane.b32.xlu0 %v557, 112
      %v569 = vpop.permute.xlu0 %568
      %v574 = vmul.f32 %v542, %v563
      %v575 = vmul.f32 %v543, %v565
      %v576 = vmul.f32 %v544, %v567
      %v577 = vmul.f32 %v545, %v569
      %v578 = vadd.f32 %v527, %v574
      %v579 = vadd.f32 %v530, %v575
      %v580 = vadd.f32 %v533, %v576
      %v581 = vadd.f32 %v536, %v577
      %v582 = vld [vmem:[%s6] sm:$0xff]
      %v583 = vld [vmem:[%s6 + $0x8] sm:$0xff]
      %v584 = vld [vmem:[%s7] sm:$0x1]
      %v586 = vperm.slane %v584, 0
      %vm588 = vcmask 130048
      %v590 = vsel %vm588, %v578, 0
      %v593 = vsel %vm588, %v579, 0
      %v596 = vsel %vm588, %v580, 0
      %v599 = vsel %vm588, %v581, 0
      %601 = vmatpush.msra.mxu0 0.0
      %602 = vmatpush.msra.mxu0 0.0
      %603 = vmatpush.msra.mxu0 0.0
      %604 = vmatpush.msra.mxu0 0.0
      %605 = vmatpush.msra.mxu0 0.0
      %606 = vmatpush.msra.mxu0 0.0
      %607 = vmatpush.msra.mxu0 0.0
      %608 = vmatpush.msra.mxu0 0.0
      %609 = vmatpush.msra.mxu0 0.0
      %610 = vmatpush.msra.mxu0 0.0
      %611 = vmatpush.msra.mxu0 0.0
      %612 = vmatpush.msra.mxu0 0.0
      %613 = vmatpush.msra.mxu0 0.0
      %614 = vmatpush.msra.mxu0 0.0
      %615 = vmatpush.msra.mxu0 %v583
      %616 = vmatpush.msra.mxu0 %v582
      %617 = vmatmul.f32.gmra.mxu0 %v590
      %v618 = vpop.f32.mrf.mxu0
      %v619 = vadd.f32 %v586, %v618
      %620 = vmatmul.f32.gmra.mxu0 %v593
      %v621 = vpop.f32.mrf.mxu0
      %v622 = vadd.f32 %v586, %v621
      %623 = vmatmul.f32.gmra.mxu0 %v596
      %v624 = vpop.f32.mrf.mxu0
      %v625 = vadd.f32 %v586, %v624
      %626 = vmatmul.f32.gmra.mxu0 %v599
      %v627 = vpop.f32.mrf.mxu0
      %v628 = vadd.f32 %v586, %v627
      %629 = vdwg.mxu0
      %v630 = vmax.f32 %v619, 0.0
      %v631 = vmax.f32 %v622, 0.0
      %v632 = vmax.f32 %v625, 0.0
      %v633 = vmax.f32 %v628, 0.0
      %v634 = vld [vmem:[%s8] sm:$0xff]
      %v635 = vld [vmem:[%s8 + $0x8] sm:$0xff]
      %v636 = vld [vmem:[%s8 + $0x10] sm:$0xff]
      %v637 = vld [vmem:[%s8 + $0x18] sm:$0xff]
      %v638 = vld [vmem:[%s8 + $0x20] sm:$0xff]
      %v639 = vld [vmem:[%s8 + $0x28] sm:$0xff]
      %v640 = vld [vmem:[%s8 + $0x30] sm:$0xff]
      %v641 = vld [vmem:[%s8 + $0x38] sm:$0xff]
      %v642 = vld [vmem:[%s9] sm:$0x1]
      %v644 = vperm.slane %v642, 0
      %v647 = vsel %vm496, %v630, 0
      %v650 = vsel %vm496, %v631, 0
      %v653 = vsel %vm496, %v632, 0
      %v656 = vsel %vm496, %v633, 0
      %658 = vmatpush.msra.mxu0 0.0
      %659 = vmatpush.msra.mxu0 0.0
      %660 = vmatpush.msra.mxu0 0.0
      %661 = vmatpush.msra.mxu0 0.0
      %662 = vmatpush.msra.mxu0 0.0
      %663 = vmatpush.msra.mxu0 0.0
      %664 = vmatpush.msra.mxu0 0.0
      %665 = vmatpush.msra.mxu0 0.0
      %666 = vmatpush.msra.mxu0 %v641
      %667 = vmatpush.msra.mxu0 %v640
      %668 = vmatpush.msra.mxu0 %v639
      %669 = vmatpush.msra.mxu0 %v638
      %670 = vmatpush.msra.mxu0 %v637
      %671 = vmatpush.msra.mxu0 %v636
      %672 = vmatpush.msra.mxu0 %v635
      %673 = vmatpush.msra.mxu0 %v634
      %674 = vmatmul.f32.gmra.mxu0 %v647
      %v675 = vpop.f32.mrf.mxu0
      %v676 = vadd.f32 %v644, %v675
      %677 = vmatmul.f32.gmra.mxu0 %v650
      %v678 = vpop.f32.mrf.mxu0
      %v679 = vadd.f32 %v644, %v678
      %680 = vmatmul.f32.gmra.mxu0 %v653
      %v681 = vpop.f32.mrf.mxu0
      %v682 = vadd.f32 %v644, %v681
      %683 = vmatmul.f32.gmra.mxu0 %v656
      %v684 = vpop.f32.mrf.mxu0
      %v685 = vadd.f32 %v644, %v684
      %686 = vdwg.mxu0
      %v687 = vsub.f32 0.0, %v676
      %v688 = vsub.f32 0.0, %v679
      %v689 = vsub.f32 0.0, %v682
      %v690 = vsub.f32 0.0, %v685
      %v691 = vmul.f32 %v687, 1.442695
      %v692 = vpow.pop %v691
      %v693 = vmul.f32 %v688, 1.442695
      %v694 = vpow.pop %v693
      %v695 = vmul.f32 %v689, 1.442695
      %v696 = vpow.pop %v695
      %v697 = vmul.f32 %v690, 1.442695
      %v698 = vpow.pop %v697
      %v699 = vadd.f32 %v692, 1.0
      %v700 = vadd.f32 %v694, 1.0
      %v701 = vadd.f32 %v696, 1.0
      %v702 = vadd.f32 %v698, 1.0
      %v703 = vrcp.pop %v699
      %v704 = vmul.f32 %v699, %v703
      %v705 = vsub.f32 1.0, %v704
      %v706 = vmul.f32 %v703, %v705
      %v707 = vadd.f32 %v703, %v706
      %vm708 = vweird.f32 %v699
      %vm709 = vweird.f32 %v703
      %vm710 = vmor %vm708, %vm709
      %v711 = vsel %vm710, %v703, %v707
      %v712 = vand.u32 2147483647, %v699
      %vm713 = vcmp.eq.f32.partialorder %v712, 8.507059e+37
      %v714 = vand.u32 %v699, 2147483648
      %v715 = vor.u32 1.1754944e-38, %v714
      %v716 = vsel %vm713, %v715, %v711
      %v717 = vmul.f32 1.0, %v716
      %v718 = vrcp.pop %v700
      %v719 = vmul.f32 %v700, %v718
      %v720 = vsub.f32 1.0, %v719
      %v721 = vmul.f32 %v718, %v720
      %v722 = vadd.f32 %v718, %v721
      %vm723 = vweird.f32 %v700
      %vm724 = vweird.f32 %v718
      %vm725 = vmor %vm723, %vm724
      %v726 = vsel %vm725, %v718, %v722
      %v727 = vand.u32 2147483647, %v700
      %vm728 = vcmp.eq.f32.partialorder %v727, 8.507059e+37
      %v729 = vand.u32 %v700, 2147483648
      %v730 = vor.u32 1.1754944e-38, %v729
      %v731 = vsel %vm728, %v730, %v726
      %v732 = vmul.f32 1.0, %v731
      %v733 = vrcp.pop %v701
      %v734 = vmul.f32 %v701, %v733
      %v735 = vsub.f32 1.0, %v734
      %v736 = vmul.f32 %v733, %v735
      %v737 = vadd.f32 %v733, %v736
      %vm738 = vweird.f32 %v701
      %vm739 = vweird.f32 %v733
      %vm740 = vmor %vm738, %vm739
      %v741 = vsel %vm740, %v733, %v737
      %v742 = vand.u32 2147483647, %v701
      %vm743 = vcmp.eq.f32.partialorder %v742, 8.507059e+37
      %v744 = vand.u32 %v701, 2147483648
      %v745 = vor.u32 1.1754944e-38, %v744
      %v746 = vsel %vm743, %v745, %v741
      %v747 = vmul.f32 1.0, %v746
      %v748 = vrcp.pop %v702
      %v749 = vmul.f32 %v702, %v748
      %v750 = vsub.f32 1.0, %v749
      %v751 = vmul.f32 %v748, %v750
      %v752 = vadd.f32 %v748, %v751
      %vm753 = vweird.f32 %v702
      %vm754 = vweird.f32 %v748
      %vm755 = vmor %vm753, %vm754
      %v756 = vsel %vm755, %v748, %v752
      %v757 = vand.u32 2147483647, %v702
      %vm758 = vcmp.eq.f32.partialorder %v757, 8.507059e+37
      %v759 = vand.u32 %v702, 2147483648
      %v760 = vor.u32 1.1754944e-38, %v759
      %v761 = vsel %vm758, %v760, %v756
      %v762 = vmul.f32 1.0, %v761
      %763 = vst.msk [vmem:[%s418] sm:$0xff] %vm438, %v717
      %764 = vst.msk [vmem:[%s418 + $0x8] sm:$0xff] %vm438, %v732
      %765 = vst.msk [vmem:[%s418 + $0x10] sm:$0xff] %vm438, %v747
      %766 = vst.msk [vmem:[%s418 + $0x18] sm:$0xff] %vm438, %v762
      %s767 = smul.u32 4, %s23
      %p768 = scmp.lt.s32.totalorder %s767, 7
      %s769 = scalar_select %p768, %s767, 7
      %s770 = smul.addr %s769, 8
      %s771 = scalar_lea.vmem %s10, %s770
      %s772 = smul.u32 4, %s23
      %p773 = scmp.lt.s32.totalorder %s772, 7
      %s774 = scalar_select %p773, %s772, 7
      %s775 = smul.addr %s774, 8
      %s776 = scalar_lea.vmem %s11, %s775
      // Predicated region
      $region61: #{tpu_custom_call.1} parent=59 // pred_check
        %p777 = pneg %p261
      $region62: #{tpu_custom_call.1} parent=59 // pred_check_branch
        %779 = sbr.rel (%p777) target = $region64
      $region63: #{tpu_custom_call.1} parent=59 // pred_region
        %s780 = smul.u32 4, %s23
      $region64: #{tpu_custom_call.1} parent=59 // pred_fallthru
        _
      // Predicated region
      $region65: #{tpu_custom_call.1} parent=59 // pred_check
        %p781 = pneg %p287
      $region66: #{tpu_custom_call.1} parent=59 // pred_check_branch
        %783 = sbr.rel (%p781) target = $region68
      $region67: #{tpu_custom_call.1} parent=59 // pred_region
        %s784 = smul.u32 4, %s23
      $region68: #{tpu_custom_call.1} parent=59 // pred_fallthru
        _
    $region60: #{tpu_custom_call.1} parent=5 // pred_fallthru
      _
    %p785 = scmp.le.s32.totalorder 2, %s18
    // Predicated region
    $region69: #{tpu_custom_call.1} parent=5 // pred_check
      %p786 = pneg %p785
    $region70: #{tpu_custom_call.1} parent=5 // pred_check_branch
      %788 = sbr.rel (%p786) target = $region72
    $region71: #{tpu_custom_call.1} parent=5 // pred_region
      %s789 = ssub.s32 %s18, 2
      // Predicated region
      $region73: #{tpu_custom_call.1} parent=71 // pred_check
        %p790 = pneg %p267
      $region74: #{tpu_custom_call.1} parent=71 // pred_check_branch
        %792 = sbr.rel (%p790) target = $region76
      $region75: #{tpu_custom_call.1} parent=71 // pred_region
        %s793 = smul.u32 4, %s24
        %p794 = scmp.lt.s32.totalorder %s793, 7
        %s795 = scalar_select %p794, %s793, 7
        %s796 = smul.addr %s795, 8
        %s797 = scalar_lea.vmem %s10, %s796
      $region76: #{tpu_custom_call.1} parent=71 // pred_fallthru
        _
      // Predicated region
      $region77: #{tpu_custom_call.1} parent=71 // pred_check
        %p798 = pneg %p293
      $region78: #{tpu_custom_call.1} parent=71 // pred_check_branch
        %800 = sbr.rel (%p798) target = $region80
      $region79: #{tpu_custom_call.1} parent=71 // pred_region
        %s801 = smul.u32 4, %s24
        %p802 = scmp.lt.s32.totalorder %s801, 7
        %s803 = scalar_select %p802, %s801, 7
        %s804 = smul.addr %s803, 8
        %s805 = scalar_lea.vmem %s11, %s804
      $region80: #{tpu_custom_call.1} parent=71 // pred_fallthru
        _
    $region72: #{tpu_custom_call.1} parent=5 // pred_fallthru
      _
  $region6: #{tpu_custom_call.1} parent=0 // loop_footer
    %s22 = sadd.s32 1, %s18
  $region7: #{tpu_custom_call.1} parent=0 // loop_footer_branch
    %17 = sbr.rel target = $region3
  $region8: #{tpu_custom_call.1} parent=0 // loop_exit
    _

</llo_original>
